<compile_context>
chip_gen: v7x
topology: tpu7x:2x2x1
jax: 0.10.0
libtpu: 0.0.40
codegen_flags: <defaults>
</compile_context>

<pallas_src>
import functools

import jax
import jax.numpy as jnp
from jax import lax
from jax.experimental import pallas as pl
from jax.experimental.pallas import tpu as pltpu


def _attention_kernel(x_ref, wq_ref, wkv_ref, wp_ref, b_ref, out_ref,
                      kv_cache, acc_ref, *, tq, dh, hb):
    qi = pl.program_id(1)                    # query-tile index
    g = pl.program_id(2)                     # head-block index (innermost)
    last_g = pl.num_programs(2) - 1
    dg = hb * dh                             # head-block width

    # ---- fused K/V projection for this head block: once per batch ----------
    @pl.when(qi == 0)
    def _():
        kv = jnp.dot(x_ref[0], wkv_ref[g],
                     preferred_element_type=jnp.float32)          # (N, 2*Dg)
        kv_cache[g] = kv.astype(kv_cache.dtype)

    # ---- fresh output-projection accumulator for this query tile -----------
    @pl.when(g == 0)
    def _():
        acc_ref[...] = jnp.zeros_like(acc_ref)

    # query tile sliced from the resident x slab (no second DMA input).
    row0 = pl.multiple_of(qi * tq, tq)
    xq = x_ref[0, pl.ds(row0, tq), :]                              # (TQ, C) bf16

    # softmax scale is already folded into Wq by the wrapper.
    q_all = jnp.dot(xq, wq_ref[g], preferred_element_type=jnp.float32)  # (TQ, Dg)
    kv = kv_cache[g]                                               # (N, 2*Dg) bf16

    # per-head attention inside the head block (short static unroll).
    o_heads = []
    for hh in range(hb):
        q_h = q_all[:, hh * dh:(hh + 1) * dh]                      # (TQ, Dh) f32
        k_h = kv[:, hh * dh:(hh + 1) * dh]                         # (N, Dh)  bf16
        v_h = kv[:, dg + hh * dh:dg + (hh + 1) * dh]               # (N, Dh)  bf16

        # scores: contract last axes of q and k (no explicit k.T transpose).
        s = lax.dot_general(q_h.astype(k_h.dtype), k_h,
                            dimension_numbers=(((1,), (1,)), ((), ())),
                            preferred_element_type=jnp.float32)    # (TQ, N)

        # numerically stable softmax; stats kept in f32, denominator applied
        # after p@v so the elementwise scaling is O(TQ*Dh), not O(TQ*N).
        m = jnp.max(s, axis=-1, keepdims=True)
        p = jnp.exp(s - m)
        l = jnp.sum(p, axis=-1, keepdims=True)                     # (TQ, 1)

        o_h = jnp.dot(p.astype(v_h.dtype), v_h,
                      preferred_element_type=jnp.float32)          # (TQ, Dh)
        o_heads.append(o_h * pl.reciprocal(l, approx=True))
        # attn_drop / proj_drop with p=0.0 -> identity.

    # one rank-Dg GEMM per head block (full/near-full contraction width).
    o_block = o_heads[0] if hb == 1 else jnp.concatenate(o_heads, axis=-1)
    acc_ref[...] += jnp.dot(o_block.astype(wp_ref.dtype), wp_ref[g],
                            preferred_element_type=jnp.float32)    # (TQ, C)

    @pl.when(g == last_g)
    def _():
        out_ref[0] = (acc_ref[...] + b_ref[...]).astype(out_ref.dtype)


def _pick_tile(n, max_tile=128):
    # TQ=128 keeps the (TQ, N) score/exp temporaries bounded on v7x's 64 MiB
    # VMEM; per-step overhead is negligible at these sizes.
    for t in (max_tile, 128, 64, 32, 16, 8):
        if t <= n and n % t == 0:
            return t
    return n


def _pick_heads_per_block(num_heads, dh, target_width=256):
    # Largest head block whose lane width Hb*Dh fits the MXU output width.
    best = 1
    for hb in range(1, num_heads + 1):
        if num_heads % hb == 0 and hb * dh <= target_width:
            best = hb
    return best


def _vmem_limit_bytes(default=64 * 1024 * 1024):
    # Raise the default scoped VMEM limit (16/32 MiB) so the resident K/V
    # cache + x slab fit at realistic ViT3D sizes, while staying below the
    # chip's physical capacity (64 MiB on v7x, 128 MiB on v5e/v6e).
    try:
        cap = pltpu.get_tpu_info().vmem_capacity_bytes
        return int(min(100 * 1024 * 1024, cap * 3 // 4))
    except Exception:
        return default


def attention_forward(x, w_qkv, w_proj, b_proj, *, num_heads, q_tile=None,
                      heads_per_block=None, compute_dtype=jnp.bfloat16):
    """x: (B, N, C); w_qkv: (3C, C) (PyTorch qkv.weight); w_proj: (C, C); b_proj: (C,)."""
    B, N, C = x.shape
    assert C % num_heads == 0
    dh = C // num_heads
    scale = dh ** (-0.5)

    tq = q_tile if q_tile is not None else _pick_tile(N)
    assert N % tq == 0
    nq = N // tq

    hb = (heads_per_block if heads_per_block is not None
          else _pick_heads_per_block(num_heads, dh))
    assert num_heads % hb == 0
    n_hb = num_heads // hb
    dg = hb * dh

    # ---- wrapper-side layout plumbing (free at steady state under jit) -----
    # PyTorch qkv.weight rows are [q | k | v]; within each slab rows are
    # head-major (h, d).  Build per-head-block operands so the kernel does
    # x @ W_block with lane-dense, head-major columns.
    wq_t = w_qkv[:C].T * scale                     # (C, C), scale folded pre-cast
    wk_t = w_qkv[C:2 * C].T
    wv_t = w_qkv[2 * C:].T

    def to_blocks(w_t):                            # (C, C) -> (n_hb, C, Dg)
        return jnp.transpose(w_t.reshape(C, n_hb, dg), (1, 0, 2))

    wq_b = to_blocks(wq_t).astype(compute_dtype)                       # (n_hb, C, Dg)
    wkv_b = jnp.concatenate([to_blocks(wk_t), to_blocks(wv_t)],
                            axis=-1).astype(compute_dtype)             # (n_hb, C, 2Dg)
    # y = merged @ w_proj.T + b  ==  sum_g merged_g @ (w_proj.T)[g*Dg:(g+1)*Dg, :]
    wp_b = jnp.transpose(w_proj).reshape(n_hb, dg, C).astype(compute_dtype)
    bias = b_proj.reshape(1, C).astype(jnp.float32)
    xc = x.astype(compute_dtype)

    kernel = functools.partial(_attention_kernel, tq=tq, dh=dh, hb=hb)

    flops = 8 * B * N * C * C + 4 * B * N * N * C
    transcendentals = B * num_heads * N * N
    bytes_accessed = (2 * B * N * C * 2                      # x in (bf16) + out
                      + B * N * C * x.dtype.itemsize
                      + 4 * C * C * 2 + 4 * C)               # resident weights + bias

    return pl.pallas_call(
        kernel,
        out_shape=jax.ShapeDtypeStruct((B, N, C), x.dtype),
        grid_spec=pltpu.PrefetchScalarGridSpec(
            num_scalar_prefetch=0,
            grid=(B, nq, n_hb),
            in_specs=[
                # x: full (N, C) slab per batch; block index only changes with
                # b, so it is DMA'd once per batch.
                pl.BlockSpec((1, N, C), lambda b, qi, g: (b, 0, 0)),
                # weights: whole-array blocks, constant index_map -> resident
                # in VMEM, DMA'd once (no per-step weight re-fetch).
                pl.BlockSpec((n_hb, C, dg), lambda b, qi, g: (0, 0, 0)),      # Wq (pre-scaled)
                pl.BlockSpec((n_hb, C, 2 * dg), lambda b, qi, g: (0, 0, 0)),  # fused Wk|Wv
                pl.BlockSpec((n_hb, dg, C), lambda b, qi, g: (0, 0, 0)),      # Wproj blocks
                pl.BlockSpec((1, C), lambda b, qi, g: (0, 0)),                # proj bias
            ],
            out_specs=pl.BlockSpec((1, tq, C), lambda b, qi, g: (b, qi, 0)),
            scratch_shapes=[
                pltpu.VMEM((n_hb, N, 2 * dg), compute_dtype),   # fused K|V cache (per batch)
                pltpu.VMEM((tq, C), jnp.float32),               # output-proj accumulator
            ],
        ),
        compiler_params=pltpu.CompilerParams(
            dimension_semantics=("parallel", "arbitrary", "arbitrary"),
            vmem_limit_bytes=_vmem_limit_bytes()),
        cost_estimate=pl.CostEstimate(flops=flops,
                                      transcendentals=transcendentals,
                                      bytes_accessed=bytes_accessed),
    )(xc, wq_b, wkv_b, wp_b, bias)


def _reference(x, w_qkv, w_proj, b_proj, *, num_heads):
    B, N, C = x.shape
    dh = C // num_heads
    scale = dh ** (-0.5)
    qkv = jnp.einsum('bnc,oc->bno', x, w_qkv)                      # (B, N, 3C)
    qkv = qkv.reshape(B, N, 3, num_heads, dh).transpose(2, 0, 3, 1, 4)
    q, k, v = qkv[0], qkv[1], qkv[2]                               # (B, H, N, Dh)
    attn = jnp.einsum('bhnd,bhmd->bhnm', q, k) * scale
    attn = jax.nn.softmax(attn, axis=-1)
    out = jnp.einsum('bhnm,bhmd->bhnd', attn, v)
    out = out.transpose(0, 2, 1, 3).reshape(B, N, C)
    return jnp.einsum('bnc,oc->bno', out, w_proj) + b_proj


if __name__ == "__main__":
    B, N, C = 2, 16, 32
    num_heads = 4

    key = jax.random.PRNGKey(0)
    kx, kq, kp, kb = jax.random.split(key, 4)
    x = jax.random.normal(kx, (B, N, C), dtype=jnp.float32)
    # Deterministic parameter init (same shapes as the nn.Module's parameters).
    w_qkv = jax.random.normal(kq, (3 * C, C), dtype=jnp.float32) * 0.05   # qkv.weight
    w_proj = jax.random.normal(kp, (C, C), dtype=jnp.float32) * 0.05      # proj.weight
    b_proj = jax.random.normal(kb, (C,), dtype=jnp.float32) * 0.05        # proj.bias

    ref = _reference(x, w_qkv, w_proj, b_proj, num_heads=num_heads)

    # General path: multiple batches, multiple query tiles, multiple head blocks.
    fn = jax.jit(functools.partial(attention_forward, num_heads=num_heads,
                                   q_tile=8, heads_per_block=2))
    out = jax.block_until_ready(fn(x, w_qkv, w_proj, b_proj))
    assert out.shape == (B, N, C)
    # bf16 matmul operands (f32 accumulation) -> compare at bf16-level tolerance.
    err = float(jnp.max(jnp.abs(out - ref)))
    assert jnp.allclose(out, ref, atol=2e-2, rtol=2e-2), err

    # Default-heuristic path (single head block / single query tile at this size).
    fn2 = jax.jit(functools.partial(attention_forward, num_heads=num_heads))
    out2 = jax.block_until_ready(fn2(x, w_qkv, w_proj, b_proj))
    err2 = float(jnp.max(jnp.abs(out2 - ref)))
    assert jnp.allclose(out2, ref, atol=2e-2, rtol=2e-2), err2

    print("KERNEL_OK")
</pallas_src>

<mosaic_0001>
module attributes {stable_mosaic.version = 11 : i64} {
  func.func @_attention_kernel(%arg0: i32, %arg1: i32, %arg2: i32, %arg3: memref<1x16x32xbf16, #tpu.memory_space<vmem>>, %arg4: memref<2x32x16xbf16, #tpu.memory_space<vmem>>, %arg5: memref<2x32x32xbf16, #tpu.memory_space<vmem>>, %arg6: memref<2x16x32xbf16, #tpu.memory_space<vmem>>, %arg7: memref<1x32xf32, #tpu.memory_space<vmem>>, %arg8: memref<1x8x32xf32, #tpu.memory_space<vmem>>, %arg9: memref<2x16x32xbf16, #tpu.memory_space<vmem>>, %arg10: memref<8x32xf32, #tpu.memory_space<vmem>>) attributes {dimension_semantics = [#tpu.dimension_semantics<parallel>, #tpu.dimension_semantics<arbitrary>, #tpu.dimension_semantics<arbitrary>], iteration_bounds = array<i64: 2, 2, 2>, scalar_prefetch = 0 : i64, scratch_operands = 2 : i64, tpu.core_type = #tpu.core_type<tc>, window_params = [{transform_indices = @transform_0, window_bounds = array<i64: 1, 16, 32>}, {pipeline_mode = #tpu.pipeline_mode<synchronous>, transform_indices = @transform_1, window_bounds = array<i64: 2, 32, 16>}, {pipeline_mode = #tpu.pipeline_mode<synchronous>, transform_indices = @transform_2, window_bounds = array<i64: 2, 32, 32>}, {pipeline_mode = #tpu.pipeline_mode<synchronous>, transform_indices = @transform_3, window_bounds = array<i64: 2, 16, 32>}, {pipeline_mode = #tpu.pipeline_mode<synchronous>, transform_indices = @transform_4, window_bounds = array<i64: 1, 32>}, {transform_indices = @transform_5, window_bounds = array<i64: 1, 8, 32>}]} {
    %c0_i32 = arith.constant 0 : i32
    %0 = arith.cmpi eq, %arg1, %c0_i32 : i32
    %1 = arith.extui %0 : i1 to i32
    %c0_i32_0 = arith.constant 0 : i32
    %2 = arith.cmpi ne, %1, %c0_i32_0 : i32
    scf.if %2 {
      %c0_24 = arith.constant 0 : index
      %c0_25 = arith.constant 0 : index
      %c0_26 = arith.constant 0 : index
      %64 = vector.load %arg3[%c0_24, %c0_25, %c0_26] : memref<1x16x32xbf16, #tpu.memory_space<vmem>>, vector<1x16x32xbf16>
      %65 = vector.shape_cast %64 : vector<1x16x32xbf16> to vector<16x32xbf16>
      %66 = arith.index_cast %arg2 : i32 to index
      %c0_27 = arith.constant 0 : index
      %c0_28 = arith.constant 0 : index
      %67 = vector.load %arg5[%66, %c0_27, %c0_28] : memref<2x32x32xbf16, #tpu.memory_space<vmem>>, vector<1x32x32xbf16>
      %68 = vector.shape_cast %67 : vector<1x32x32xbf16> to vector<32x32xbf16>
      %cst_29 = arith.constant dense<0.000000e+00> : vector<16x32xf32>
      %69 = tpu.matmul %65, %68, %cst_29 {dimension_numbers = #tpu.dot_dimension_numbers<[1], [0], [0], [1], [0, 0, 1, 1], [], []>} : vector<16x32xbf16>, vector<32x32xbf16>, vector<16x32xf32> -> vector<16x32xf32>
      %70 = arith.truncf %69 : vector<16x32xf32> to vector<16x32xbf16>
      %71 = arith.index_cast %arg2 : i32 to index
      %c0_30 = arith.constant 0 : index
      %c0_31 = arith.constant 0 : index
      %72 = vector.load %arg9[%71, %c0_30, %c0_31] : memref<2x16x32xbf16, #tpu.memory_space<vmem>>, vector<1x16x32xbf16>
      %73 = vector.shape_cast %72 : vector<1x16x32xbf16> to vector<16x32xbf16>
      %74 = vector.shape_cast %70 : vector<16x32xbf16> to vector<1x16x32xbf16>
      tpu.vector_store %arg9[%71, %c0_30, %c0_31], %74 {strides = array<i32>} : memref<2x16x32xbf16, #tpu.memory_space<vmem>>, vector<1x16x32xbf16>,
    } else {
    }
    %c0_i32_1 = arith.constant 0 : i32
    %3 = arith.cmpi eq, %arg2, %c0_i32_1 : i32
    %4 = arith.extui %3 : i1 to i32
    %c0_i32_2 = arith.constant 0 : i32
    %5 = arith.cmpi ne, %4, %c0_i32_2 : i32
    scf.if %5 {
      %cst_24 = arith.constant 0.000000e+00 : f32
      %64 = vector.broadcast %cst_24 : f32 to vector<8x32xf32>
      %c0_25 = arith.constant 0 : index
      %c0_26 = arith.constant 0 : index
      %65 = vector.load %arg10[%c0_25, %c0_26] : memref<8x32xf32, #tpu.memory_space<vmem>>, vector<8x32xf32>
      tpu.vector_store %arg10[%c0_25, %c0_26], %64 {strides = array<i32>} : memref<8x32xf32, #tpu.memory_space<vmem>>, vector<8x32xf32>,
    } else {
    }
    %c8_i32 = arith.constant 8 : i32
    %6 = arith.muli %arg1, %c8_i32 : i32
    %7 = tpu.assume_multiple %6, 8 : i32
    %c0 = arith.constant 0 : index
    %8 = arith.index_cast %7 : i32 to index
    %c0_3 = arith.constant 0 : index
    %9 = vector.load %arg3[%c0, %8, %c0_3] : memref<1x16x32xbf16, #tpu.memory_space<vmem>>, vector<1x8x32xbf16>
    %10 = vector.shape_cast %9 : vector<1x8x32xbf16> to vector<8x32xbf16>
    %11 = arith.index_cast %arg2 : i32 to index
    %c0_4 = arith.constant 0 : index
    %c0_5 = arith.constant 0 : index
    %12 = vector.load %arg4[%11, %c0_4, %c0_5] : memref<2x32x16xbf16, #tpu.memory_space<vmem>>, vector<1x32x16xbf16>
    %13 = vector.shape_cast %12 : vector<1x32x16xbf16> to vector<32x16xbf16>
    %cst = arith.constant dense<0.000000e+00> : vector<8x16xf32>
    %14 = tpu.matmul %10, %13, %cst {dimension_numbers = #tpu.dot_dimension_numbers<[1], [0], [0], [1], [0, 0, 1, 1], [], []>} : vector<8x32xbf16>, vector<32x16xbf16>, vector<8x16xf32> -> vector<8x16xf32>
    %15 = arith.index_cast %arg2 : i32 to index
    %c0_6 = arith.constant 0 : index
    %c0_7 = arith.constant 0 : index
    %16 = vector.load %arg9[%15, %c0_6, %c0_7] : memref<2x16x32xbf16, #tpu.memory_space<vmem>>, vector<1x16x32xbf16>
    %17 = vector.shape_cast %16 : vector<1x16x32xbf16> to vector<16x32xbf16>
    %18 = vector.extract_strided_slice %14 {offsets = [0, 0], sizes = [8, 8], strides = [1, 1]} : vector<8x16xf32> to vector<8x8xf32>
    %19 = vector.extract_strided_slice %17 {offsets = [0, 0], sizes = [16, 8], strides = [1, 1]} : vector<16x32xbf16> to vector<16x8xbf16>
    %20 = vector.extract_strided_slice %17 {offsets = [0, 16], sizes = [16, 8], strides = [1, 1]} : vector<16x32xbf16> to vector<16x8xbf16>
    %21 = arith.truncf %18 : vector<8x8xf32> to vector<8x8xbf16>
    %cst_8 = arith.constant dense<0.000000e+00> : vector<8x16xf32>
    %22 = tpu.matmul %21, %19, %cst_8 {dimension_numbers = #tpu.dot_dimension_numbers<[1], [1], [0], [0], [0, 0, 1, 0], [], []>} : vector<8x8xbf16>, vector<16x8xbf16>, vector<8x16xf32> -> vector<8x16xf32>
    %cst_9 = arith.constant dense<0xFF800000> : vector<8xf32>
    %23 = vector.multi_reduction <maximumf>, %22, %cst_9 [1] : vector<8x16xf32> to vector<8xf32>
    %24 = vector.shape_cast %23 : vector<8xf32> to vector<8x1xf32>
    %25 = vector.broadcast %24 : vector<8x1xf32> to vector<8x16xf32>
    %26 = arith.subf %22, %25 : vector<8x16xf32>
    %27 = math.exp %26 : vector<8x16xf32>
    %cst_10 = arith.constant dense<0.000000e+00> : vector<8xf32>
    %28 = vector.multi_reduction <add>, %27, %cst_10 [1] : vector<8x16xf32> to vector<8xf32>
    %29 = vector.shape_cast %28 : vector<8xf32> to vector<8x1xf32>
    %30 = arith.truncf %27 : vector<8x16xf32> to vector<8x16xbf16>
    %cst_11 = arith.constant dense<0.000000e+00> : vector<8x8xf32>
    %31 = tpu.matmul %30, %20, %cst_11 {dimension_numbers = #tpu.dot_dimension_numbers<[1], [0], [0], [1], [0, 0, 1, 1], [], []>} : vector<8x16xbf16>, vector<16x8xbf16>, vector<8x8xf32> -> vector<8x8xf32>
    %32 = tpu.reciprocal %29 {approx = true} : vector<8x1xf32> -> vector<8x1xf32>
    %33 = vector.broadcast %32 : vector<8x1xf32> to vector<8x8xf32>
    %34 = arith.mulf %31, %33 : vector<8x8xf32>
    %35 = vector.extract_strided_slice %14 {offsets = [0, 8], sizes = [8, 8], strides = [1, 1]} : vector<8x16xf32> to vector<8x8xf32>
    %36 = vector.extract_strided_slice %17 {offsets = [0, 8], sizes = [16, 8], strides = [1, 1]} : vector<16x32xbf16> to vector<16x8xbf16>
    %37 = vector.extract_strided_slice %17 {offsets = [0, 24], sizes = [16, 8], strides = [1, 1]} : vector<16x32xbf16> to vector<16x8xbf16>
    %38 = arith.truncf %35 : vector<8x8xf32> to vector<8x8xbf16>
    %cst_12 = arith.constant dense<0.000000e+00> : vector<8x16xf32>
    %39 = tpu.matmul %38, %36, %cst_12 {dimension_numbers = #tpu.dot_dimension_numbers<[1], [1], [0], [0], [0, 0, 1, 0], [], []>} : vector<8x8xbf16>, vector<16x8xbf16>, vector<8x16xf32> -> vector<8x16xf32>
    %cst_13 = arith.constant dense<0xFF800000> : vector<8xf32>
    %40 = vector.multi_reduction <maximumf>, %39, %cst_13 [1] : vector<8x16xf32> to vector<8xf32>
    %41 = vector.shape_cast %40 : vector<8xf32> to vector<8x1xf32>
    %42 = vector.broadcast %41 : vector<8x1xf32> to vector<8x16xf32>
    %43 = arith.subf %39, %42 : vector<8x16xf32>
    %44 = math.exp %43 : vector<8x16xf32>
    %cst_14 = arith.constant dense<0.000000e+00> : vector<8xf32>
    %45 = vector.multi_reduction <add>, %44, %cst_14 [1] : vector<8x16xf32> to vector<8xf32>
    %46 = vector.shape_cast %45 : vector<8xf32> to vector<8x1xf32>
    %47 = arith.truncf %44 : vector<8x16xf32> to vector<8x16xbf16>
    %cst_15 = arith.constant dense<0.000000e+00> : vector<8x8xf32>
    %48 = tpu.matmul %47, %37, %cst_15 {dimension_numbers = #tpu.dot_dimension_numbers<[1], [0], [0], [1], [0, 0, 1, 1], [], []>} : vector<8x16xbf16>, vector<16x8xbf16>, vector<8x8xf32> -> vector<8x8xf32>
    %49 = tpu.reciprocal %46 {approx = true} : vector<8x1xf32> -> vector<8x1xf32>
    %50 = vector.broadcast %49 : vector<8x1xf32> to vector<8x8xf32>
    %51 = arith.mulf %48, %50 : vector<8x8xf32>
    %52 = tpu.concatenate %34, %51 in 1 : vector<8x8xf32>, vector<8x8xf32> -> vector<8x16xf32>
    %c0_16 = arith.constant 0 : index
    %c0_17 = arith.constant 0 : index
    %53 = vector.load %arg10[%c0_16, %c0_17] : memref<8x32xf32, #tpu.memory_space<vmem>>, vector<8x32xf32>
    %54 = arith.truncf %52 : vector<8x16xf32> to vector<8x16xbf16>
    %55 = arith.index_cast %arg2 : i32 to index
    %c0_18 = arith.constant 0 : index
    %c0_19 = arith.constant 0 : index
    %56 = vector.load %arg6[%55, %c0_18, %c0_19] : memref<2x16x32xbf16, #tpu.memory_space<vmem>>, vector<1x16x32xbf16>
    %57 = vector.shape_cast %56 : vector<1x16x32xbf16> to vector<16x32xbf16>
    %cst_20 = arith.constant dense<0.000000e+00> : vector<8x32xf32>
    %58 = tpu.matmul %54, %57, %cst_20 {dimension_numbers = #tpu.dot_dimension_numbers<[1], [0], [0], [1], [0, 0, 1, 1], [], []>} : vector<8x16xbf16>, vector<16x32xbf16>, vector<8x32xf32> -> vector<8x32xf32>
    %59 = arith.addf %53, %58 : vector<8x32xf32>
    %c0_21 = arith.constant 0 : index
    %c0_22 = arith.constant 0 : index
    %60 = vector.load %arg10[%c0_21, %c0_22] : memref<8x32xf32, #tpu.memory_space<vmem>>, vector<8x32xf32>
    tpu.vector_store %arg10[%c0_21, %c0_22], %59 {strides = array<i32>} : memref<8x32xf32, #tpu.memory_space<vmem>>, vector<8x32xf32>,
    %c1_i32 = arith.constant 1 : i32
    %61 = arith.cmpi eq, %arg2, %c1_i32 : i32
    %62 = arith.extui %61 : i1 to i32
    %c0_i32_23 = arith.constant 0 : i32
    %63 = arith.cmpi ne, %62, %c0_i32_23 : i32
    scf.if %63 {
      %c0_24 = arith.constant 0 : index
      %c0_25 = arith.constant 0 : index
      %64 = vector.load %arg10[%c0_24, %c0_25] : memref<8x32xf32, #tpu.memory_space<vmem>>, vector<8x32xf32>
      %c0_26 = arith.constant 0 : index
      %c0_27 = arith.constant 0 : index
      %65 = vector.load %arg7[%c0_26, %c0_27] : memref<1x32xf32, #tpu.memory_space<vmem>>, vector<1x32xf32>
      %66 = vector.broadcast %65 : vector<1x32xf32> to vector<8x32xf32>
      %67 = arith.addf %64, %66 : vector<8x32xf32>
      %c0_28 = arith.constant 0 : index
      %c0_29 = arith.constant 0 : index
      %c0_30 = arith.constant 0 : index
      %68 = vector.load %arg8[%c0_28, %c0_29, %c0_30] : memref<1x8x32xf32, #tpu.memory_space<vmem>>, vector<1x8x32xf32>
      %69 = vector.shape_cast %68 : vector<1x8x32xf32> to vector<8x32xf32>
      %70 = vector.shape_cast %67 : vector<8x32xf32> to vector<1x8x32xf32>
      tpu.vector_store %arg8[%c0_28, %c0_29, %c0_30], %70 {strides = array<i32>} : memref<1x8x32xf32, #tpu.memory_space<vmem>>, vector<1x8x32xf32>,
    } else {
    }
    return
  }
  func.func @transform_0(%arg0: i32, %arg1: i32, %arg2: i32) -> (i32, i32, i32) {
    %c0_i32 = arith.constant 0 : i32
    %c0_i32_0 = arith.constant 0 : i32
    %c0_i32_1 = arith.constant 0 : i32
    return %arg0, %c0_i32, %c0_i32_0 : i32, i32, i32
  }
  func.func @transform_1(%arg0: i32, %arg1: i32, %arg2: i32) -> (i32, i32, i32) {
    %c0_i32 = arith.constant 0 : i32
    %c0_i32_0 = arith.constant 0 : i32
    %c0_i32_1 = arith.constant 0 : i32
    %c0_i32_2 = arith.constant 0 : i32
    return %c0_i32, %c0_i32_0, %c0_i32_1 : i32, i32, i32
  }
  func.func @transform_2(%arg0: i32, %arg1: i32, %arg2: i32) -> (i32, i32, i32) {
    %c0_i32 = arith.constant 0 : i32
    %c0_i32_0 = arith.constant 0 : i32
    %c0_i32_1 = arith.constant 0 : i32
    %c0_i32_2 = arith.constant 0 : i32
    return %c0_i32, %c0_i32_0, %c0_i32_1 : i32, i32, i32
  }
  func.func @transform_3(%arg0: i32, %arg1: i32, %arg2: i32) -> (i32, i32, i32) {
    %c0_i32 = arith.constant 0 : i32
    %c0_i32_0 = arith.constant 0 : i32
    %c0_i32_1 = arith.constant 0 : i32
    %c0_i32_2 = arith.constant 0 : i32
    return %c0_i32, %c0_i32_0, %c0_i32_1 : i32, i32, i32
  }
  func.func @transform_4(%arg0: i32, %arg1: i32, %arg2: i32) -> (i32, i32) {
    %c0_i32 = arith.constant 0 : i32
    %c0_i32_0 = arith.constant 0 : i32
    %c0_i32_1 = arith.constant 0 : i32
    return %c0_i32, %c0_i32_0 : i32, i32
  }
  func.func @transform_5(%arg0: i32, %arg1: i32, %arg2: i32) -> (i32, i32, i32) {
    %c0_i32 = arith.constant 0 : i32
    %c0_i32_0 = arith.constant 0 : i32
    return %arg0, %arg1, %c0_i32 : i32, i32, i32
  }
}

</mosaic_0001>

<llo_original>
// kernel: attention_forward.1
$region0: #{attention_forward.1}
  #allocation0 [shape = 'u32[]', space=smem, size = 0x4, offset = 0x4, fixed_abs, tag = 'smem constant byte address 0x4 - core index']
  #allocation1 [shape = 'u32[144,128]{1,0:T(1,128)}', space=vmem, size = 0x12000, scoped, tag = 'internal scratch']
  #allocation2 [shape = 'bf16[2,16,32]{2,1,0:T(16,128)(2,1)}', space=vmem, size = 0x2000, scoped, tag = 'scratch operand']
  #allocation3 [shape = 'f32[8,32]{1,0:T(8,128)}', space=vmem, size = 0x1000, scoped, tag = 'scratch operand']
  %s0 = inlined_call_operand.hbm [shape: bf16[2,16,32], index: 0, kind: input, shape index: {}]
  %s1 = inlined_call_operand.hbm [shape: bf16[2,32,16], index: 1, kind: input, shape index: {}]
  %s2 = inlined_call_operand.hbm [shape: bf16[2,32,32], index: 2, kind: input, shape index: {}]
  %s3 = inlined_call_operand.hbm [shape: bf16[2,16,32], index: 3, kind: input, shape index: {}]
  %s4 = inlined_call_operand.hbm [shape: f32[1,32], index: 4, kind: input, shape index: {}]
  %s5 = inlined_call_operand.hbm [shape: f32[2,16,32], index: 5, kind: output, shape index: {}]
  %s6 = sld [smem:[#allocation0]]
  $region85: #{attention_forward.1} parent=0
    _
  %s8 = ssub.s32 1, %s6
  %s9 = scalar_select 0, %s8, %s6
  $region1: #{attention_forward.1} parent=0
    #allocation4 [shape = 'u8[8192]{0}', space=vmem, size = 0x2000, scoped, tag = 'input window, operand 0']
    #allocation5 [shape = 's32[2]{0}', space=sflag, size = 0x8, scoped, tag = 'scoped memory for attention_forward.1']
    #allocation6 [shape = 's32[2]{0}', space=sflag, size = 0x8, scoped, tag = 'scoped memory for attention_forward.1']
    #allocation7 [shape = 'u8[16384]{0}', space=vmem, size = 0x4000, scoped, tag = 'input window, operand 1, single buffered']
    #allocation8 [shape = 's32[1]{0}', space=sflag, size = 0x4, scoped, tag = 'scoped memory for attention_forward.1']
    #allocation9 [shape = 'u8[16384]{0}', space=vmem, size = 0x4000, scoped, tag = 'input window, operand 2, single buffered']
    #allocation10 [shape = 'u8[8192]{0}', space=vmem, size = 0x2000, scoped, tag = 'input window, operand 3, single buffered']
    #allocation11 [shape = 's32[1]{0}', space=sflag, size = 0x4, scoped, tag = 'scoped memory for attention_forward.1']
    #allocation12 [shape = 'u8[512]{0}', space=vmem, size = 0x400, scoped, tag = 'input window, operand 4, single buffered']
    #allocation13 [shape = 'u8[8192]{0}', space=vmem, size = 0x2000, scoped, tag = 'output window, operand 0']
    %10 = vsyncpa [#allocation5], 0
    %s11 = scalar_lea.sflag [#allocation5], 1
    %12 = vsyncpa %s11, 0
    %13 = vsyncpa [#allocation8], 0
    %14 = vsyncpa [#allocation11], 0
    %15 = vsyncpa [#allocation6], 0
    %s16 = scalar_lea.sflag [#allocation6], 1
    %17 = vsyncpa %s16, 0
    loop: start=0, step=1, limit=10
    $region2: #{attention_forward.1} parent=1 // loop_pre_header
      _
    $region3: #{attention_forward.1} parent=1 // loop_header
      %s19 = sphi 0, %s23
      %p20 = scmp.ge.s32.totalorder %s19, 10
      %s26 = sphi 0, %s45
      %s27 = sphi 0, %s41
      %s28 = sphi 0, %s37
      %s29 = sphi 0, %s26
      %s30 = sphi 0, %s27
      %s31 = sphi 0, %s28
      %s32 = sphi 0, %s29
      %s33 = sphi 0, %s30
      %s34 = sphi 0, %s31
      %s48 = sphi 0, %s50
      %s51 = sphi 0, %s48
      %s52 = sphi 0, %s51
      %s68 = sphi 0, %s52
      %s72 = sphi 0, %s72
      %s74 = sphi 0, %s72
      %s75 = sphi 0, %s74
      %s89 = sphi 0, %s75
      %s93 = sphi 0, %s93
      %s95 = sphi 0, %s93
      %s96 = sphi 0, %s95
      %s110 = sphi 0, %s96
      %s114 = sphi 0, %s114
      %s116 = sphi 0, %s114
      %s117 = sphi 0, %s116
      %s131 = sphi 0, %s117
      %s135 = sphi 0, %s135
      %s137 = sphi 0, %s135
      %s138 = sphi 0, %s137
      %s152 = sphi 0, %s138
      %s160 = sphi 0, %s162
      %s163 = sphi 0, %s160
      %s164 = sphi 0, %s163
      %s180 = sphi 0, %s164
    $region4: #{attention_forward.1} parent=1 // loop_header_branch
      %22 = sbr.rel (%p20) target = $region8
    $region5: #{attention_forward.1} parent=1 // loop_body
      %s24 = ssub.s32 %s19, 1
      %s25 = ssub.s32 %s19, 2
      %s35 = sadd.s32 1, %s28
      %p36 = scmp.ge.s32.totalorder %s35, 2
      %s37 = scalar_select %p36, 0, %s35
      %s38 = sadd.s32 1, %s27
      %s39 = scalar_select %p36, %s38, %s27
      %p40 = scmp.ge.s32.totalorder %s39, 2
      %s41 = scalar_select %p40, 0, %s39
      %s42 = sadd.s32 1, %s26
      %s43 = scalar_select %p40, %s42, %s26
      %p44 = scmp.ge.s32.totalorder %s43, 2
      %s45 = scalar_select %p44, 0, %s43
      %s46 = ssub.s32 %s26, %s45
      %p47 = scmp.eq.s32.totalorder %s46, 0
      %s49 = sadd.s32 %s48, 1
      %s50 = scalar_select %p47, %s48, %s49
      %p53 = pneg %p47
      %p54 = scmp.eq.s32.totalorder %s19, 7
      %p55 = por %p53, %p54
      %p56 = scmp.ne.s32.totalorder %s48, %s51
      %p57 = scmp.eq.s32.totalorder %s19, 0
      %p58 = por %p56, %p57
      %p59 = scmp.ne.s32.totalorder %s48, %s51
      %p60 = scmp.eq.s32.totalorder %s24, 7
      %p61 = por %p59, %p60
      %p62 = scmp.ne.s32.totalorder %s51, %s52
      %p63 = scmp.eq.s32.totalorder %s24, 0
      %p64 = por %p62, %p63
      %p65 = scmp.ne.s32.totalorder %s51, %s52
      %p66 = scmp.eq.s32.totalorder %s25, 7
      %p67 = por %p65, %p66
      %p69 = scmp.ne.s32.totalorder %s52, %s68
      %p70 = scmp.eq.s32.totalorder %s25, 0
      %p71 = por %p69, %p70
      %s73 = sadd.s32 %s72, 1
      %p76 = scmp.eq.s32.totalorder %s19, 7
      %p77 = scmp.ne.s32.totalorder %s72, %s74
      %p78 = scmp.eq.s32.totalorder %s19, 0
      %p79 = por %p77, %p78
      %p80 = scmp.ne.s32.totalorder %s72, %s74
      %p81 = scmp.eq.s32.totalorder %s24, 7
      %p82 = por %p80, %p81
      %p83 = scmp.ne.s32.totalorder %s74, %s75
      %p84 = scmp.eq.s32.totalorder %s24, 0
      %p85 = por %p83, %p84
      %p86 = scmp.ne.s32.totalorder %s74, %s75
      %p87 = scmp.eq.s32.totalorder %s25, 7
      %p88 = por %p86, %p87
      %p90 = scmp.ne.s32.totalorder %s75, %s89
      %p91 = scmp.eq.s32.totalorder %s25, 0
      %p92 = por %p90, %p91
      %s94 = sadd.s32 %s93, 1
      %p97 = scmp.eq.s32.totalorder %s19, 7
      %p98 = scmp.ne.s32.totalorder %s93, %s95
      %p99 = scmp.eq.s32.totalorder %s19, 0
      %p100 = por %p98, %p99
      %p101 = scmp.ne.s32.totalorder %s93, %s95
      %p102 = scmp.eq.s32.totalorder %s24, 7
      %p103 = por %p101, %p102
      %p104 = scmp.ne.s32.totalorder %s95, %s96
      %p105 = scmp.eq.s32.totalorder %s24, 0
      %p106 = por %p104, %p105
      %p107 = scmp.ne.s32.totalorder %s95, %s96
      %p108 = scmp.eq.s32.totalorder %s25, 7
      %p109 = por %p107, %p108
      %p111 = scmp.ne.s32.totalorder %s96, %s110
      %p112 = scmp.eq.s32.totalorder %s25, 0
      %p113 = por %p111, %p112
      %s115 = sadd.s32 %s114, 1
      %p118 = scmp.eq.s32.totalorder %s19, 7
      %p119 = scmp.ne.s32.totalorder %s114, %s116
      %p120 = scmp.eq.s32.totalorder %s19, 0
      %p121 = por %p119, %p120
      %p122 = scmp.ne.s32.totalorder %s114, %s116
      %p123 = scmp.eq.s32.totalorder %s24, 7
      %p124 = por %p122, %p123
      %p125 = scmp.ne.s32.totalorder %s116, %s117
      %p126 = scmp.eq.s32.totalorder %s24, 0
      %p127 = por %p125, %p126
      %p128 = scmp.ne.s32.totalorder %s116, %s117
      %p129 = scmp.eq.s32.totalorder %s25, 7
      %p130 = por %p128, %p129
      %p132 = scmp.ne.s32.totalorder %s117, %s131
      %p133 = scmp.eq.s32.totalorder %s25, 0
      %p134 = por %p132, %p133
      %s136 = sadd.s32 %s135, 1
      %p139 = scmp.eq.s32.totalorder %s19, 7
      %p140 = scmp.ne.s32.totalorder %s135, %s137
      %p141 = scmp.eq.s32.totalorder %s19, 0
      %p142 = por %p140, %p141
      %p143 = scmp.ne.s32.totalorder %s135, %s137
      %p144 = scmp.eq.s32.totalorder %s24, 7
      %p145 = por %p143, %p144
      %p146 = scmp.ne.s32.totalorder %s137, %s138
      %p147 = scmp.eq.s32.totalorder %s24, 0
      %p148 = por %p146, %p147
      %p149 = scmp.ne.s32.totalorder %s137, %s138
      %p150 = scmp.eq.s32.totalorder %s25, 7
      %p151 = por %p149, %p150
      %p153 = scmp.ne.s32.totalorder %s138, %s152
      %p154 = scmp.eq.s32.totalorder %s25, 0
      %p155 = por %p153, %p154
      %s156 = ssub.s32 %s26, %s45
      %s157 = ssub.s32 %s27, %s41
      %s158 = sor.u32 %s156, %s157
      %p159 = scmp.eq.s32.totalorder %s158, 0
      %s161 = sadd.s32 %s160, 1
      %s162 = scalar_select %p159, %s160, %s161
      %p165 = pneg %p159
      %p166 = scmp.eq.s32.totalorder %s19, 7
      %p167 = por %p165, %p166
      %p168 = scmp.ne.s32.totalorder %s160, %s163
      %p169 = scmp.eq.s32.totalorder %s19, 0
      %p170 = por %p168, %p169
      %p171 = scmp.ne.s32.totalorder %s160, %s163
      %p172 = scmp.eq.s32.totalorder %s24, 7
      %p173 = por %p171, %p172
      %p174 = scmp.ne.s32.totalorder %s163, %s164
      %p175 = scmp.eq.s32.totalorder %s24, 0
      %p176 = por %p174, %p175
      %p177 = scmp.ne.s32.totalorder %s163, %s164
      %p178 = scmp.eq.s32.totalorder %s25, 7
      %p179 = por %p177, %p178
      %p181 = scmp.ne.s32.totalorder %s164, %s180
      %p182 = scmp.eq.s32.totalorder %s25, 0
      %p183 = por %p181, %p182
      %p184 = scmp.le.s32.totalorder 1, %s19
      %p185 = scmp.lt.s32.totalorder %s19, 9
      %p186 = pnand %p184, %p185
      %p187 = pneg %p186
      // Predicated region
      $region9: #{attention_forward.1} parent=5 // pred_check
        _
      $region10: #{attention_forward.1} parent=5 // pred_check_branch
        %189 = sbr.rel (%p186) target = $region12
      $region11: #{attention_forward.1} parent=5 // pred_region
        %s190 = ssub.s32 %s19, 1
        // Predicated region
        $region13: #{attention_forward.1} parent=11 // pred_check
          %p191 = pneg %p85
        $region14: #{attention_forward.1} parent=11 // pred_check_branch
          %193 = sbr.rel (%p191) target = $region16
        $region15: #{attention_forward.1} parent=11 // pred_region
          %s195 = ssub.s32 512, 512
          %196 = vsyncadd [#allocation8], %s195
          %s197 = sshll.u32 [#allocation7], 4
          %s198 = int_to_ptr.vmem [resolvable:$true] %s197
          %203 = dma.hbm_to_vmem [thread:$0]  %s1, 512, %s198, [#allocation8], 64, 64, 4
        $region16: #{attention_forward.1} parent=11 // pred_fallthru
          _
        // Predicated region
        $region17: #{attention_forward.1} parent=11 // pred_check
          %p204 = pneg %p106
        $region18: #{attention_forward.1} parent=11 // pred_check_branch
          %206 = sbr.rel (%p204) target = $region20
        $region19: #{attention_forward.1} parent=11 // pred_region
          %s208 = ssub.s32 512, 512
          %209 = vsyncadd [#allocation8], %s208
          %s210 = sshll.u32 [#allocation9], 4
          %s211 = int_to_ptr.vmem [resolvable:$true] %s210
          %216 = dma.hbm_to_vmem [thread:$0]  %s2, 512, %s211, [#allocation8], 64, 64, 4
        $region20: #{attention_forward.1} parent=11 // pred_fallthru
          _
        // Predicated region
        $region21: #{attention_forward.1} parent=11 // pred_check
          %p217 = pneg %p127
        $region22: #{attention_forward.1} parent=11 // pred_check_branch
          %219 = sbr.rel (%p217) target = $region24
        $region23: #{attention_forward.1} parent=11 // pred_region
          %s221 = ssub.s32 256, 256
          %222 = vsyncadd [#allocation11], %s221
          %s223 = sshll.u32 [#allocation10], 4
          %s224 = int_to_ptr.vmem [resolvable:$true] %s223
          %229 = dma.hbm_to_vmem [thread:$0]  %s3, 256, %s224, [#allocation11], 64, 64, 4
        $region24: #{attention_forward.1} parent=11 // pred_fallthru
          _
        // Predicated region
        $region25: #{attention_forward.1} parent=11 // pred_check
          %p230 = pneg %p148
        $region26: #{attention_forward.1} parent=11 // pred_check_branch
          %232 = sbr.rel (%p230) target = $region28
        $region27: #{attention_forward.1} parent=11 // pred_region
          %s234 = ssub.s32 16, 16
          %235 = vsyncadd [#allocation11], %s234
          %s237 = sshll.u32 [#allocation12], 4
          %s238 = int_to_ptr.vmem [resolvable:$true] %s237
          %240 = dma.hbm_to_vmem [thread:$0]  %s4, 16, %s238, [#allocation11]
        $region28: #{attention_forward.1} parent=11 // pred_fallthru
          _
      $region12: #{attention_forward.1} parent=5 // pred_fallthru
        _
      %p241 = scmp.lt.s32.totalorder %s19, 8
      // Predicated region
      $region29: #{attention_forward.1} parent=5 // pred_check
        %p242 = pneg %p241
      $region30: #{attention_forward.1} parent=5 // pred_check_branch
        %244 = sbr.rel (%p242) target = $region32
      $region31: #{attention_forward.1} parent=5 // pred_region
        // Predicated region
        $region33: #{attention_forward.1} parent=31 // pred_check
          %p245 = pneg %p58
        $region34: #{attention_forward.1} parent=31 // pred_check_branch
          %247 = sbr.rel (%p245) target = $region36
        $region35: #{attention_forward.1} parent=31 // pred_region
          %s248 = sand.u32 %s48, 1
          %s249 = scalar_lea.sflag [#allocation5], %s248
          %s250 = sand.u32 %s48, 1
          %s251 = smul.addr %s250, 8
          %s252 = scalar_lea.vmem [#allocation4], %s251
          %s254 = ssub.s32 128, 128
          %255 = vsyncadd %s249, %s254
          %s256 = smul.addr %s26, 2
          %s257 = smul.addr %s256, 64
          %s258 = scalar_lea.hbm %s0, %s257
          %s259 = sshll.u32 %s252, 4
          %s260 = int_to_ptr.vmem [resolvable:$true] %s259
          %265 = dma.hbm_to_vmem [thread:$0]  %s258, 128, %s260, %s249, 64, 64, 4
        $region36: #{attention_forward.1} parent=31 // pred_fallthru
          _
      $region32: #{attention_forward.1} parent=5 // pred_fallthru
        _
      %p266 = scmp.le.s32.totalorder 1, %s19
      %p267 = scmp.lt.s32.totalorder %s19, 9
      %p268 = pnand %p266, %p267
      %p269 = pneg %p268
      // Predicated region
      $region37: #{attention_forward.1} parent=5 // pred_check
        _
      $region38: #{attention_forward.1} parent=5 // pred_check_branch
        %271 = sbr.rel (%p268) target = $region40
      $region39: #{attention_forward.1} parent=5 // pred_region
        %s272 = ssub.s32 %s19, 1
        %s273 = sand.u32 %s51, 1
        %s274 = scalar_lea.sflag [#allocation5], %s273
        %s275 = sand.u32 %s51, 1
        %s276 = smul.addr %s275, 8
        %s277 = scalar_lea.vmem [#allocation4], %s276
        // Predicated region
        $region41: #{attention_forward.1} parent=39 // pred_check
          %p278 = pneg %p64
        $region42: #{attention_forward.1} parent=39 // pred_check_branch
          %280 = sbr.rel (%p278) target = $region44
        $region43: #{attention_forward.1} parent=39 // pred_region
          %281 = dma.done %s274, 128
        $region44: #{attention_forward.1} parent=39 // pred_fallthru
          _
        // Predicated region
        $region45: #{attention_forward.1} parent=39 // pred_check
          %p282 = pneg %p85
        $region46: #{attention_forward.1} parent=39 // pred_check_branch
          %284 = sbr.rel (%p282) target = $region48
        $region47: #{attention_forward.1} parent=39 // pred_region
          %285 = dma.done [#allocation8], 512
        $region48: #{attention_forward.1} parent=39 // pred_fallthru
          _
        // Predicated region
        $region49: #{attention_forward.1} parent=39 // pred_check
          %p286 = pneg %p106
        $region50: #{attention_forward.1} parent=39 // pred_check_branch
          %288 = sbr.rel (%p286) target = $region52
        $region51: #{attention_forward.1} parent=39 // pred_region
          %289 = dma.done [#allocation8], 512
        $region52: #{attention_forward.1} parent=39 // pred_fallthru
          _
        // Predicated region
        $region53: #{attention_forward.1} parent=39 // pred_check
          %p290 = pneg %p127
        $region54: #{attention_forward.1} parent=39 // pred_check_branch
          %292 = sbr.rel (%p290) target = $region56
        $region55: #{attention_forward.1} parent=39 // pred_region
          %293 = dma.done [#allocation11], 256
        $region56: #{attention_forward.1} parent=39 // pred_fallthru
          _
        // Predicated region
        $region57: #{attention_forward.1} parent=39 // pred_check
          %p294 = pneg %p148
        $region58: #{attention_forward.1} parent=39 // pred_check_branch
          %296 = sbr.rel (%p294) target = $region60
        $region59: #{attention_forward.1} parent=39 // pred_region
          %297 = dma.done [#allocation11], 16
        $region60: #{attention_forward.1} parent=39 // pred_fallthru
          _
        %s298 = sand.u32 %s51, 1
        %s299 = scalar_lea.sflag [#allocation5], %s298
        %s300 = sand.u32 %s51, 1
        %s301 = smul.addr %s300, 8
        %s302 = scalar_lea.vmem [#allocation4], %s301
        %p303 = pneg %p64
        %p304 = pneg %p61
        %p305 = pneg %p85
        %p306 = pneg %p82
        %p307 = pneg %p106
        %p308 = pneg %p103
        %p309 = pneg %p127
        %p310 = pneg %p124
        %p311 = pneg %p148
        %p312 = pneg %p145
        %p313 = pneg %p176
        %p314 = pneg %p173
        %s315 = sand.u32 %s163, 1
        %s316 = scalar_lea.sflag [#allocation6], %s315
        %s317 = sand.u32 %s163, 1
        %s318 = smul.addr %s317, 8
        %s319 = scalar_lea.vmem [#allocation13], %s318
        %p321 = scmp.eq.s32.totalorder %s30, 0
        // Predicated region
        $region61: #{attention_forward.1} parent=39 // pred_check
          %p322 = pneg %p321
        $region62: #{attention_forward.1} parent=39 // pred_check_branch
          %324 = sbr.rel (%p322) target = $region64
        $region63: #{attention_forward.1} parent=39 // pred_region
          %v325 = vld [vmem:[%s277] sm:$0xf]
          %v326 = vld [vmem:[%s277 + $0x4] sm:$0xf]
          %s327 = smul.u32 %s31, 4
          %s328 = smul.addr %s327, 4
          %s329 = scalar_lea.vmem [#allocation9], %s328
          %v330 = vld [vmem:[%s329] sm:$0xf]
          %v331 = vld [vmem:[%s329 + $0x4] sm:$0xf]
          %v332 = vld [vmem:[%s329 + $0x8] sm:$0xf]
          %v333 = vld [vmem:[%s329 + $0xc] sm:$0xf]
          %v336 = vunpack.c.l.b16 %v325
          %v337 = vunpack.c.l.b16 %v326
          %v338 = vpack.c.b16 %v337, %v336
          %v343 = vunpack.c.l.b16 %v330
          %v344 = vunpack.c.l.b16 %v331
          %v345 = vunpack.c.l.b16 %v332
          %v346 = vunpack.c.l.b16 %v333
          %v347 = vpack.c.b16 %v344, %v343
          %v348 = vpack.c.b16 %v346, %v345
          %vm351 = vcmask 261120
          %v353 = vsel %vm351, %v338, 0
          %355 = vmatprep.subr.bf16.mxu0 0
          %356 = vmatpush1.bf16.msra.mxu0 %v347
          %357 = vmatprep.subr.bf16.mxu0 0
          %358 = vmatpush1.bf16.msra.mxu0 %v348
          %359 = vmatprep.subr.bf16.mxu0 0
          %360 = vmatpush1.bf16.msra.mxu0 0
          %361 = vmatprep.subr.bf16.mxu0 0
          %362 = vmatpush1.bf16.msra.mxu0 0
          %363 = vmatprep.subr.bf16.mxu0 0
          %364 = vmatpush1.bf16.msra.mxu0 0
          %365 = vmatprep.subr.bf16.mxu0 0
          %366 = vmatpush1.bf16.msra.mxu0 0
          %367 = vmatprep.subr.bf16.mxu0 0
          %368 = vmatpush1.bf16.msra.mxu0 0
          %369 = vmatprep.subr.bf16.mxu0 0
          %370 = vmatpush1.bf16.msra.mxu0 0
          %371 = vmatprep.subr.bf16.mxu0 0
          %372 = vmatpush1.bf16.msra.mxu0 0
          %373 = vmatprep.subr.bf16.mxu0 0
          %374 = vmatpush1.bf16.msra.mxu0 0
          %375 = vmatprep.subr.bf16.mxu0 0
          %376 = vmatpush1.bf16.msra.mxu0 0
          %377 = vmatprep.subr.bf16.mxu0 0
          %378 = vmatpush1.bf16.msra.mxu0 0
          %379 = vmatprep.subr.bf16.mxu0 0
          %380 = vmatpush1.bf16.msra.mxu0 0
          %381 = vmatprep.subr.bf16.mxu0 0
          %382 = vmatpush1.bf16.msra.mxu0 0
          %383 = vmatprep.subr.bf16.mxu0 0
          %384 = vmatpush1.bf16.msra.mxu0 0
          %385 = vmatprep.subr.bf16.mxu0 0
          %386 = vmatpush1.bf16.msra.mxu0 0
          %387 = vmatprep.mubr.bf16.mxu0 0
          %388 = vmatmul.mubr.bf16.gmra.mrb[0].mxu0 %v353
          %v389 = vpop.f32.mrb[0].mxu0
          %v390 = vadd.f32 0.0, %v389
          %v391 = vpop.f32.mrb[0].mxu0
          %v392 = vpop.f32.mrb[0].mxu0
          %v393 = vadd.f32 0.0, %v392
          %v394 = vpop.f32.mrb[0].mxu0
          %395 = vdwg.mxu0
          %v396 = vpack.c.bf16 %v393, %v390
          %s397 = smul.addr %s31, 8
          %s398 = scalar_lea.vmem [#allocation2], %s397
          %399 = vst.msk [vmem:[%s398] sm:$0xff] %vm351, %v396
        $region64: #{attention_forward.1} parent=39 // pred_fallthru
          _
        %p400 = scmp.eq.s32.totalorder %s31, 0
        // Predicated region
        $region65: #{attention_forward.1} parent=39 // pred_check
          %p401 = pneg %p400
        $region66: #{attention_forward.1} parent=39 // pred_check_branch
          %403 = sbr.rel (%p401) target = $region68
        $region67: #{attention_forward.1} parent=39 // pred_region
          %vm404 = vcmask 261120
          %405 = vst.msk [vmem:[#allocation3] sm:$0xff] %vm404, 0.0
        $region68: #{attention_forward.1} parent=39 // pred_fallthru
          _
        %s406 = smul.u32 %s30, 8
        %s407 = sshra.s32 %s406, 3
        %s408 = sand.u32 %s406, 7
        %s409 = smul.addr %s407, 4
        %s410 = scalar_lea.vmem %s277, %s409 [#allocation4]
        %v411 = vld [vmem:[%s410] sm:$0xf]
        %s412 = smul.u32 %s31, 4
        %s413 = smul.addr %s412, 4
        %s414 = scalar_lea.vmem [#allocation7], %s413
        %v415 = vld [vmem:[%s414] sm:$0xf]
        %v416 = vld [vmem:[%s414 + $0x4] sm:$0xf]
        %v417 = vld [vmem:[%s414 + $0x8] sm:$0xf]
        %v418 = vld [vmem:[%s414 + $0xc] sm:$0xf]
        %v423 = vunpack.c.l.b16 %v415
        %v424 = vunpack.c.l.b16 %v416
        %v425 = vunpack.c.l.b16 %v417
        %v426 = vunpack.c.l.b16 %v418
        %v427 = vpack.c.b16 %v424, %v423
        %v428 = vpack.c.b16 %v426, %v425
        %vm431 = vcmask 261120
        %v433 = vsel %vm431, %v411, 0
        %435 = vmatprep.subr.bf16.mxu0 0
        %436 = vmatpush1.bf16.msra.mxu0 %v427
        %437 = vmatprep.subr.bf16.mxu0 0
        %438 = vmatpush1.bf16.msra.mxu0 %v428
        %439 = vmatprep.subr.bf16.mxu0 0
        %440 = vmatpush1.bf16.msra.mxu0 0
        %441 = vmatprep.subr.bf16.mxu0 0
        %442 = vmatpush1.bf16.msra.mxu0 0
        %443 = vmatprep.subr.bf16.mxu0 0
        %444 = vmatpush1.bf16.msra.mxu0 0
        %445 = vmatprep.subr.bf16.mxu0 0
        %446 = vmatpush1.bf16.msra.mxu0 0
        %447 = vmatprep.subr.bf16.mxu0 0
        %448 = vmatpush1.bf16.msra.mxu0 0
        %449 = vmatprep.subr.bf16.mxu0 0
        %450 = vmatpush1.bf16.msra.mxu0 0
        %451 = vmatprep.subr.bf16.mxu0 0
        %452 = vmatpush1.bf16.msra.mxu0 0
        %453 = vmatprep.subr.bf16.mxu0 0
        %454 = vmatpush1.bf16.msra.mxu0 0
        %455 = vmatprep.subr.bf16.mxu0 0
        %456 = vmatpush1.bf16.msra.mxu0 0
        %457 = vmatprep.subr.bf16.mxu0 0
        %458 = vmatpush1.bf16.msra.mxu0 0
        %459 = vmatprep.subr.bf16.mxu0 0
        %460 = vmatpush1.bf16.msra.mxu0 0
        %461 = vmatprep.subr.bf16.mxu0 0
        %462 = vmatpush1.bf16.msra.mxu0 0
        %463 = vmatprep.subr.bf16.mxu0 0
        %464 = vmatpush1.bf16.msra.mxu0 0
        %465 = vmatprep.subr.bf16.mxu0 0
        %466 = vmatpush1.bf16.msra.mxu0 0
        %467 = vmatprep.mubr.bf16.mxu0 0
        %468 = vmatmul.mubr.bf16.gmra.mrb[0].mxu0 %v433
        %v469 = vpop.f32.mrb[0].mxu0
        %v470 = vadd.f32 0.0, %v469
        %v471 = vpop.f32.mrb[0].mxu0
        %v472 = vpop.f32.mrb[0].mxu0
        %v473 = vpop.f32.mrb[0].mxu0
        %474 = vdwg.mxu0
        %s475 = smul.addr %s31, 8
        %s476 = scalar_lea.vmem [#allocation2], %s475
        %v477 = vld [vmem:[%s476] sm:$0xff]
        %v478 = vpack.c.bf16 %v470, %v470
        %vm479 = vcmask 64512
        %v481 = vsel %vm479, %v478, 0
        %v484 = vsel %vm479, %v477, 0
        %486 = vmatprep.subr.bf16.mxu0 0
        %487 = vmatpush1.bf16.xpose.msra.mxu0 %v484
        %488 = vmatprep.subr.bf16.mxu0 0
        %489 = vmatpush1.bf16.xpose.msra.mxu0 0
        %490 = vmatprep.subr.bf16.mxu0 0
        %491 = vmatpush1.bf16.xpose.msra.mxu0 0
        %492 = vmatprep.subr.bf16.mxu0 0
        %493 = vmatpush1.bf16.xpose.msra.mxu0 0
        %494 = vmatprep.subr.bf16.mxu0 0
        %495 = vmatpush1.bf16.xpose.msra.mxu0 0
        %496 = vmatprep.subr.bf16.mxu0 0
        %497 = vmatpush1.bf16.xpose.msra.mxu0 0
        %498 = vmatprep.subr.bf16.mxu0 0
        %499 = vmatpush1.bf16.xpose.msra.mxu0 0
        %500 = vmatprep.subr.bf16.mxu0 0
        %501 = vmatpush1.bf16.xpose.msra.mxu0 0
        %502 = vmatprep.subr.bf16.mxu0 0
        %503 = vmatpush1.bf16.xpose.msra.mxu0 0
        %504 = vmatprep.subr.bf16.mxu0 0
        %505 = vmatpush1.bf16.xpose.msra.mxu0 0
        %506 = vmatprep.subr.bf16.mxu0 0
        %507 = vmatpush1.bf16.xpose.msra.mxu0 0
        %508 = vmatprep.subr.bf16.mxu0 0
        %509 = vmatpush1.bf16.xpose.msra.mxu0 0
        %510 = vmatprep.subr.bf16.mxu0 0
        %511 = vmatpush1.bf16.xpose.msra.mxu0 0
        %512 = vmatprep.subr.bf16.mxu0 0
        %513 = vmatpush1.bf16.xpose.msra.mxu0 0
        %514 = vmatprep.subr.bf16.mxu0 0
        %515 = vmatpush1.bf16.xpose.msra.mxu0 0
        %516 = vmatprep.subr.bf16.mxu0 0
        %517 = vmatpush1.bf16.xpose.msra.mxu0 0
        %518 = vmatprep.mubr.bf16.mxu0 0
        %519 = vmatmul.mubr.bf16.gmra.mrb[0].mxu0 %v481
        %v520 = vpop.f32.mrb[0].mxu0
        %v521 = vadd.f32 0.0, %v520
        %v522 = vpop.f32.mrb[0].mxu0
        %v523 = vpop.f32.mrb[0].mxu0
        %v524 = vpop.f32.mrb[0].mxu0
        %525 = vdwg.mxu0
        %vm526 = vcmask 130048
        %v527 = vsel %vm526, %v521, -inf
        %528 = vmax.xlane.f32.xlu0 %v527
        %v529 = vpop.xlane.xlu0 %528
        %v530 = vsub.f32 %v521, %v529
        %v531 = vmul.f32 %v530, 1.442695
        %v532 = vpow.pop %v531
        %v533 = vsel %vm526, %v532, 0.0
        %534 = vadd.xlane.f32.xlu0 %v533
        %v535 = vpop.xlane.xlu0 %534
        %v536 = vpack.c.bf16 %v532, %v532
        %538 = vrot.lane.b32.xlu0 %v477, 112
        %v539 = vpop.permute.xlu0 %538
        %v542 = vsel %vm526, %v536, 0
        %544 = vmatprep.subr.bf16.mxu0 0
        %545 = vmatpush1.bf16.msra.mxu0 %v539
        %546 = vmatprep.subr.bf16.mxu0 0
        %547 = vmatpush1.bf16.msra.mxu0 0
        %548 = vmatprep.subr.bf16.mxu0 0
        %549 = vmatpush1.bf16.msra.mxu0 0
        %550 = vmatprep.subr.bf16.mxu0 0
        %551 = vmatpush1.bf16.msra.mxu0 0
        %552 = vmatprep.subr.bf16.mxu0 0
        %553 = vmatpush1.bf16.msra.mxu0 0
        %554 = vmatprep.subr.bf16.mxu0 0
        %555 = vmatpush1.bf16.msra.mxu0 0
        %556 = vmatprep.subr.bf16.mxu0 0
        %557 = vmatpush1.bf16.msra.mxu0 0
        %558 = vmatprep.subr.bf16.mxu0 0
        %559 = vmatpush1.bf16.msra.mxu0 0
        %560 = vmatprep.subr.bf16.mxu0 0
        %561 = vmatpush1.bf16.msra.mxu0 0
        %562 = vmatprep.subr.bf16.mxu0 0
        %563 = vmatpush1.bf16.msra.mxu0 0
        %564 = vmatprep.subr.bf16.mxu0 0
        %565 = vmatpush1.bf16.msra.mxu0 0
        %566 = vmatprep.subr.bf16.mxu0 0
        %567 = vmatpush1.bf16.msra.mxu0 0
        %568 = vmatprep.subr.bf16.mxu0 0
        %569 = vmatpush1.bf16.msra.mxu0 0
        %570 = vmatprep.subr.bf16.mxu0 0
        %571 = vmatpush1.bf16.msra.mxu0 0
        %572 = vmatprep.subr.bf16.mxu0 0
        %573 = vmatpush1.bf16.msra.mxu0 0
        %574 = vmatprep.subr.bf16.mxu0 0
        %575 = vmatpush1.bf16.msra.mxu0 0
        %576 = vmatprep.mubr.bf16.mxu0 0
        %577 = vmatmul.mubr.bf16.gmra.mrb[0].mxu0 %v542
        %v578 = vpop.f32.mrb[0].mxu0
        %v579 = vadd.f32 0.0, %v578
        %v580 = vpop.f32.mrb[0].mxu0
        %v581 = vpop.f32.mrb[0].mxu0
        %v582 = vpop.f32.mrb[0].mxu0
        %583 = vdwg.mxu0
        %v584 = vrcp.pop %v535
        %v585 = vmul.f32 %v579, %v584
        %587 = vrot.lane.b32.xlu0 %v478, 120
        %v588 = vpop.permute.xlu0 %587
        %589 = vrot.lane.b32.xlu0 %v477, 120
        %v590 = vpop.permute.xlu0 %589
        %v592 = vsel %vm479, %v588, 0
        %v595 = vsel %vm479, %v590, 0
        %597 = vmatprep.subr.bf16.mxu0 0
        %598 = vmatpush1.bf16.xpose.msra.mxu0 %v595
        %599 = vmatprep.subr.bf16.mxu0 0
        %600 = vmatpush1.bf16.xpose.msra.mxu0 0
        %601 = vmatprep.subr.bf16.mxu0 0
        %602 = vmatpush1.bf16.xpose.msra.mxu0 0
        %603 = vmatprep.subr.bf16.mxu0 0
        %604 = vmatpush1.bf16.xpose.msra.mxu0 0
        %605 = vmatprep.subr.bf16.mxu0 0
        %606 = vmatpush1.bf16.xpose.msra.mxu0 0
        %607 = vmatprep.subr.bf16.mxu0 0
        %608 = vmatpush1.bf16.xpose.msra.mxu0 0
        %609 = vmatprep.subr.bf16.mxu0 0
        %610 = vmatpush1.bf16.xpose.msra.mxu0 0
        %611 = vmatprep.subr.bf16.mxu0 0
        %612 = vmatpush1.bf16.xpose.msra.mxu0 0
        %613 = vmatprep.subr.bf16.mxu0 0
        %614 = vmatpush1.bf16.xpose.msra.mxu0 0
        %615 = vmatprep.subr.bf16.mxu0 0
        %616 = vmatpush1.bf16.xpose.msra.mxu0 0
        %617 = vmatprep.subr.bf16.mxu0 0
        %618 = vmatpush1.bf16.xpose.msra.mxu0 0
        %619 = vmatprep.subr.bf16.mxu0 0
        %620 = vmatpush1.bf16.xpose.msra.mxu0 0
        %621 = vmatprep.subr.bf16.mxu0 0
        %622 = vmatpush1.bf16.xpose.msra.mxu0 0
        %623 = vmatprep.subr.bf16.mxu0 0
        %624 = vmatpush1.bf16.xpose.msra.mxu0 0
        %625 = vmatprep.subr.bf16.mxu0 0
        %626 = vmatpush1.bf16.xpose.msra.mxu0 0
        %627 = vmatprep.subr.bf16.mxu0 0
        %628 = vmatpush1.bf16.xpose.msra.mxu0 0
        %629 = vmatprep.mubr.bf16.mxu0 0
        %630 = vmatmul.mubr.bf16.gmra.mrb[0].mxu0 %v592
        %v631 = vpop.f32.mrb[0].mxu0
        %v632 = vadd.f32 0.0, %v631
        %v633 = vpop.f32.mrb[0].mxu0
        %v634 = vpop.f32.mrb[0].mxu0
        %v635 = vpop.f32.mrb[0].mxu0
        %636 = vdwg.mxu0
        %v637 = vsel %vm526, %v632, -inf
        %638 = vmax.xlane.f32.xlu0 %v637
        %v639 = vpop.xlane.xlu0 %638
        %v640 = vsub.f32 %v632, %v639
        %v641 = vmul.f32 %v640, 1.442695
        %v642 = vpow.pop %v641
        %v643 = vsel %vm526, %v642, 0.0
        %644 = vadd.xlane.f32.xlu0 %v643
        %v645 = vpop.xlane.xlu0 %644
        %v646 = vpack.c.bf16 %v642, %v642
        %647 = vrot.lane.b32.xlu0 %v477, 104
        %v648 = vpop.permute.xlu0 %647
        %v651 = vsel %vm526, %v646, 0
        %653 = vmatprep.subr.bf16.mxu0 0
        %654 = vmatpush1.bf16.msra.mxu0 %v648
        %655 = vmatprep.subr.bf16.mxu0 0
        %656 = vmatpush1.bf16.msra.mxu0 0
        %657 = vmatprep.subr.bf16.mxu0 0
        %658 = vmatpush1.bf16.msra.mxu0 0
        %659 = vmatprep.subr.bf16.mxu0 0
        %660 = vmatpush1.bf16.msra.mxu0 0
        %661 = vmatprep.subr.bf16.mxu0 0
        %662 = vmatpush1.bf16.msra.mxu0 0
        %663 = vmatprep.subr.bf16.mxu0 0
        %664 = vmatpush1.bf16.msra.mxu0 0
        %665 = vmatprep.subr.bf16.mxu0 0
        %666 = vmatpush1.bf16.msra.mxu0 0
        %667 = vmatprep.subr.bf16.mxu0 0
        %668 = vmatpush1.bf16.msra.mxu0 0
        %669 = vmatprep.subr.bf16.mxu0 0
        %670 = vmatpush1.bf16.msra.mxu0 0
        %671 = vmatprep.subr.bf16.mxu0 0
        %672 = vmatpush1.bf16.msra.mxu0 0
        %673 = vmatprep.subr.bf16.mxu0 0
        %674 = vmatpush1.bf16.msra.mxu0 0
        %675 = vmatprep.subr.bf16.mxu0 0
        %676 = vmatpush1.bf16.msra.mxu0 0
        %677 = vmatprep.subr.bf16.mxu0 0
        %678 = vmatpush1.bf16.msra.mxu0 0
        %679 = vmatprep.subr.bf16.mxu0 0
        %680 = vmatpush1.bf16.msra.mxu0 0
        %681 = vmatprep.subr.bf16.mxu0 0
        %682 = vmatpush1.bf16.msra.mxu0 0
        %683 = vmatprep.subr.bf16.mxu0 0
        %684 = vmatpush1.bf16.msra.mxu0 0
        %685 = vmatprep.mubr.bf16.mxu0 0
        %686 = vmatmul.mubr.bf16.gmra.mrb[0].mxu0 %v651
        %v687 = vpop.f32.mrb[0].mxu0
        %v688 = vadd.f32 0.0, %v687
        %v689 = vpop.f32.mrb[0].mxu0
        %v690 = vpop.f32.mrb[0].mxu0
        %v691 = vpop.f32.mrb[0].mxu0
        %692 = vdwg.mxu0
        %v693 = vrcp.pop %v645
        %v694 = vmul.f32 %v688, %v693
        %696 = vrot.lane.b32.xlu0 %v694, 8
        %v697 = vpop.permute.xlu0 %696
        %v699 = vsel %vm479, %v585, %v697
        %v700 = vld [vmem:[#allocation3] sm:$0xff]
        %v701 = vpack.c.bf16 %v699, %v699
        %s702 = smul.u32 %s31, 2
        %s703 = smul.addr %s702, 4
        %s704 = scalar_lea.vmem [#allocation10], %s703
        %v705 = vld [vmem:[%s704] sm:$0xf]
        %v706 = vld [vmem:[%s704 + $0x4] sm:$0xf]
        %v709 = vunpack.c.l.b16 %v705
        %v710 = vunpack.c.l.b16 %v706
        %v711 = vpack.c.b16 %v710, %v709
        %v714 = vsel %vm526, %v701, 0
        %716 = vmatprep.subr.bf16.mxu0 0
        %717 = vmatpush1.bf16.msra.mxu0 %v711
        %718 = vmatprep.subr.bf16.mxu0 0
        %719 = vmatpush1.bf16.msra.mxu0 0
        %720 = vmatprep.subr.bf16.mxu0 0
        %721 = vmatpush1.bf16.msra.mxu0 0
        %722 = vmatprep.subr.bf16.mxu0 0
        %723 = vmatpush1.bf16.msra.mxu0 0
        %724 = vmatprep.subr.bf16.mxu0 0
        %725 = vmatpush1.bf16.msra.mxu0 0
        %726 = vmatprep.subr.bf16.mxu0 0
        %727 = vmatpush1.bf16.msra.mxu0 0
        %728 = vmatprep.subr.bf16.mxu0 0
        %729 = vmatpush1.bf16.msra.mxu0 0
        %730 = vmatprep.subr.bf16.mxu0 0
        %731 = vmatpush1.bf16.msra.mxu0 0
        %732 = vmatprep.subr.bf16.mxu0 0
        %733 = vmatpush1.bf16.msra.mxu0 0
        %734 = vmatprep.subr.bf16.mxu0 0
        %735 = vmatpush1.bf16.msra.mxu0 0
        %736 = vmatprep.subr.bf16.mxu0 0
        %737 = vmatpush1.bf16.msra.mxu0 0
        %738 = vmatprep.subr.bf16.mxu0 0
        %739 = vmatpush1.bf16.msra.mxu0 0
        %740 = vmatprep.subr.bf16.mxu0 0
        %741 = vmatpush1.bf16.msra.mxu0 0
        %742 = vmatprep.subr.bf16.mxu0 0
        %743 = vmatpush1.bf16.msra.mxu0 0
        %744 = vmatprep.subr.bf16.mxu0 0
        %745 = vmatpush1.bf16.msra.mxu0 0
        %746 = vmatprep.subr.bf16.mxu0 0
        %747 = vmatpush1.bf16.msra.mxu0 0
        %748 = vmatprep.mubr.bf16.mxu0 0
        %749 = vmatmul.mubr.bf16.gmra.mrb[0].mxu0 %v714
        %v750 = vpop.f32.mrb[0].mxu0
        %v751 = vadd.f32 0.0, %v750
        %v752 = vpop.f32.mrb[0].mxu0
        %v753 = vpop.f32.mrb[0].mxu0
        %v754 = vpop.f32.mrb[0].mxu0
        %755 = vdwg.mxu0
        %v756 = vadd.f32 %v700, %v751
        %757 = vst.msk [vmem:[#allocation3] sm:$0xff] %vm431, %v756
        %p758 = scmp.eq.s32.totalorder %s31, 1
        // Predicated region
        $region69: #{attention_forward.1} parent=39 // pred_check
          %p759 = pneg %p758
        $region70: #{attention_forward.1} parent=39 // pred_check_branch
          %761 = sbr.rel (%p759) target = $region72
        $region71: #{attention_forward.1} parent=39 // pred_region
          %v762 = vld [vmem:[#allocation3] sm:$0xff]
          %v763 = vld [vmem:[#allocation12] sm:$0x1]
          %v765 = vlaneseq
          %v766 = vshrl.u32 %v765, 7
          %v767 = vsub.s32 0, %v766
          %v768 = vrot.slane %v763, %v767
          %v770 = vadd.f32 %v762, %v768
          %771 = vst.msk [vmem:[%s319] sm:$0xff] %vm431, %v770
        $region72: #{attention_forward.1} parent=39 // pred_fallthru
          _
        %s772 = sand.u32 %s163, 1
        %s773 = scalar_lea.sflag [#allocation6], %s772
        %s774 = sand.u32 %s163, 1
        %s775 = smul.addr %s774, 8
        %s776 = scalar_lea.vmem [#allocation13], %s775
        // Predicated region
        $region73: #{attention_forward.1} parent=39 // pred_check
          %p777 = pneg %p173
        $region74: #{attention_forward.1} parent=39 // pred_check_branch
          %779 = sbr.rel (%p777) target = $region76
        $region75: #{attention_forward.1} parent=39 // pred_region
          %s781 = ssub.s32 128, 128
          %782 = vsyncadd %s773, %s781
          %s783 = smul.addr %s29, 2
          %s784 = sadd.s32 %s30, %s783
          %s785 = smul.addr %s784, 128
          %s786 = scalar_lea.hbm %s5, %s785
          %s788 = sshll.u32 %s776, 4
          %s789 = int_to_ptr.vmem [resolvable:$true] %s788
          %791 = dma.vmem_to_hbm [thread:$0]  %s789, 128, %s786, %s773
        $region76: #{attention_forward.1} parent=39 // pred_fallthru
          _
      $region40: #{attention_forward.1} parent=5 // pred_fallthru
        _
      %p792 = scmp.le.s32.totalorder 2, %s19
      // Predicated region
      $region77: #{attention_forward.1} parent=5 // pred_check
        %p793 = pneg %p792
      $region78: #{attention_forward.1} parent=5 // pred_check_branch
        %795 = sbr.rel (%p793) target = $region80
      $region79: #{attention_forward.1} parent=5 // pred_region
        %s796 = ssub.s32 %s19, 2
        // Predicated region
        $region81: #{attention_forward.1} parent=79 // pred_check
          %p797 = pneg %p179
        $region82: #{attention_forward.1} parent=79 // pred_check_branch
          %799 = sbr.rel (%p797) target = $region84
        $region83: #{attention_forward.1} parent=79 // pred_region
          %s800 = sand.u32 %s164, 1
          %s801 = scalar_lea.sflag [#allocation6], %s800
          %s802 = sand.u32 %s164, 1
          %s803 = smul.addr %s802, 8
          %s804 = scalar_lea.vmem [#allocation13], %s803
          %805 = dma.done %s801, 128
        $region84: #{attention_forward.1} parent=79 // pred_fallthru
          _
      $region80: #{attention_forward.1} parent=5 // pred_fallthru
        _
    $region6: #{attention_forward.1} parent=1 // loop_footer
      %s23 = sadd.s32 1, %s19
    $region7: #{attention_forward.1} parent=1 // loop_footer_branch
      %18 = sbr.rel target = $region3
    $region8: #{attention_forward.1} parent=1 // loop_exit
      _
    %806 = vsyncpa [#allocation5], 1
    %s807 = scalar_lea.sflag [#allocation5], 1
    %808 = vsyncpa %s807, 1
    %809 = vsyncpa [#allocation8], 1
    %810 = vsyncpa [#allocation11], 1
    %811 = vsyncpa [#allocation6], 1
    %s812 = scalar_lea.sflag [#allocation6], 1
    %813 = vsyncpa %s812, 1

</llo_original>
